<compile_context>
chip_gen: v5e
topology: v5e:2x2
jax: 0.10.0
libtpu: 0.0.40
codegen_flags: <defaults>
</compile_context>

<pallas_src>
import re

import jax
import jax.numpy as jnp
from jax.experimental import pallas as pl
from jax.experimental.pallas import tpu as pltpu

_LANE = 512  # lane-dense block width (multiple of 128) -> wide unmasked stores

_gen_cache = None


def _tpu_generation():
    """Best-effort TPU generation (5, 6, 7, ...); 0 if unknown."""
    global _gen_cache
    if _gen_cache is None:
        gen = 0
        try:
            kind = jax.devices()[0].device_kind
            m = re.search(r"(\d+)", kind)
            if m:
                gen = int(m.group(1))
        except Exception:
            gen = 0
        _gen_cache = gen
    return _gen_cache


def _sine_kernel(omega_ref, x_ref, o_ref):
    # omega_ref is an f32 SMEM scalar (scalar prefetch); f32 * bf16/f32
    # promotes the multiply and sin to f32, then we cast back to the I/O dtype.
    # NOTE(v7x): if profiling shows this kernel VALU-bound (sin polynomial),
    # the next lever is a cheaper range-reduced sin approximation -- kept the
    # full-precision jnp.sin here for correctness.
    o_ref[...] = jnp.sin(omega_ref[0] * x_ref[...]).astype(o_ref.dtype)


def _sine_slab(slab, omega_arr, block_bytes, vmem_limit_bytes):
    """Run the Pallas kernel over a (rows, _LANE) slab; no padding required."""
    rows, C = slab.shape
    itemsize = jnp.dtype(slab.dtype).itemsize
    # Byte-sized tile: constant block bytes across dtypes (f32 -> 1024/2048
    # rows, bf16 -> 2048/4096 rows). Multiple of 8 sublanes.
    tr = max((block_bytes // (C * itemsize)) // 8 * 8, 8)
    if rows <= tr:
        tr = rows  # single full-array block (allowed even if rows % 8 != 0)
    grid = (pl.cdiv(rows, tr),)  # Pallas masks the ragged last block

    return pl.pallas_call(
        _sine_kernel,
        out_shape=jax.ShapeDtypeStruct((rows, C), slab.dtype),
        grid_spec=pltpu.PrefetchScalarGridSpec(
            num_scalar_prefetch=1,
            grid=grid,
            in_specs=[pl.BlockSpec((tr, C), lambda i, w: (i, 0))],
            out_specs=pl.BlockSpec((tr, C), lambda i, w: (i, 0)),
        ),
        compiler_params=pltpu.CompilerParams(
            dimension_semantics=("parallel",),  # shards grid across TCs on v7x
            vmem_limit_bytes=vmem_limit_bytes,
        ),
    )(omega_arr, slab)


def sine(x, omega):
    """Applies sin(omega * x) elementwise via a Pallas TPU kernel."""
    orig_shape = x.shape
    dtype = x.dtype
    n = x.size
    if n == 0:
        return x

    gen = _tpu_generation()
    # 2 MiB blocks for v5e/unknown (16 MiB default scoped VMEM), 4 MiB for
    # v6e/v7x; buffer footprints (8 / 16 MiB) fit every default scoped limit.
    block_bytes = (4 << 20) if gen >= 6 else (2 << 20)
    vmem_limit_bytes = (40 << 20) if gen >= 6 else None

    C = _LANE
    flat = x.reshape(-1)
    n_main = (n // C) * C
    omega_arr = jnp.asarray([omega], dtype=jnp.float32)
    omega_f32 = jnp.float32(omega)

    if n_main == n:
        # Fully 512-aligned: zero padding, zero slice-back.
        slab = flat.reshape(n // C, C)
        out = _sine_slab(slab, omega_arr, block_bytes, vmem_limit_bytes)
        return out.reshape(orig_shape)

    if n_main == 0:
        # Tiny input (< 512 elements): a kernel launch isn't worth it.
        return jnp.sin(omega_f32 * flat).astype(dtype).reshape(orig_shape)

    # Ragged: kernel on the 512-aligned prefix, plain jnp.sin (f32 compute) on
    # the short (<512-element) tail; avoids padding / re-slicing the full array.
    slab = flat[:n_main].reshape(n_main // C, C)
    main_out = _sine_slab(slab, omega_arr, block_bytes, vmem_limit_bytes)
    tail_out = jnp.sin(omega_f32 * flat[n_main:]).astype(dtype)
    return jnp.concatenate([main_out.reshape(-1), tail_out]).reshape(orig_shape)


if __name__ == "__main__":
    key = jax.random.PRNGKey(0)
    k0, k1, k2 = jax.random.split(key, 3)
    omega = 30.0  # typical SIREN omega

    # Primary test: small 4D input (N, *) -- 2*4*16*16 = 2048 elems (aligned).
    x = jax.random.normal(k0, (2, 4, 16, 16), dtype=jnp.float32)
    y = jax.block_until_ready(sine(x, omega))
    y_ref = jnp.sin(omega * x)
    assert y.shape == x.shape and y.dtype == x.dtype
    assert jnp.allclose(y, y_ref, atol=1e-4, rtol=1e-5)

    # Ragged size: exercises the prefix-kernel + tail path (1500 = 2*512 + 476).
    x2 = jax.random.normal(k1, (5, 300), dtype=jnp.float32)
    y2 = jax.block_until_ready(sine(x2, omega))
    assert jnp.allclose(y2, jnp.sin(omega * x2), atol=1e-4, rtol=1e-5)

    # bf16 I/O (compute stays f32 inside the kernel).
    x3 = jax.random.normal(k2, (4, 8, 64), dtype=jnp.bfloat16)
    y3 = jax.block_until_ready(sine(x3, omega))
    y3_ref = jnp.sin(omega * x3.astype(jnp.float32)).astype(jnp.bfloat16)
    assert y3.shape == x3.shape and y3.dtype == jnp.bfloat16
    assert jnp.allclose(y3.astype(jnp.float32), y3_ref.astype(jnp.float32),
                        atol=2e-2, rtol=2e-2)

    print("KERNEL_OK")
</pallas_src>

<mosaic_0001>
module attributes {stable_mosaic.version = 11 : i64} {
  func.func @_sine_kernel(%arg0: i32, %arg1: memref<1xf32, #tpu.memory_space<smem>>, %arg2: memref<4x512xf32, #tpu.memory_space<vmem>>, %arg3: memref<4x512xf32, #tpu.memory_space<vmem>>) attributes {dimension_semantics = [#tpu.dimension_semantics<parallel>], iteration_bounds = array<i64: 1>, scalar_prefetch = 1 : i64, scratch_operands = 0 : i64, tpu.core_type = #tpu.core_type<tc>, window_params = [{transform_indices = @transform_0, window_bounds = array<i64: 4, 512>}, {transform_indices = @transform_1, window_bounds = array<i64: 4, 512>}]} {
    %c0 = arith.constant 0 : index
    %0 = memref.load %arg1[%c0] : memref<1xf32, #tpu.memory_space<smem>>
    %c0_0 = arith.constant 0 : index
    %c0_1 = arith.constant 0 : index
    %1 = vector.load %arg2[%c0_0, %c0_1] : memref<4x512xf32, #tpu.memory_space<vmem>>, vector<4x512xf32>
    %2 = vector.broadcast %0 : f32 to vector<4x512xf32>
    %3 = arith.mulf %2, %1 : vector<4x512xf32>
    %4 = math.sin %3 : vector<4x512xf32>
    %c0_2 = arith.constant 0 : index
    %c0_3 = arith.constant 0 : index
    %5 = vector.load %arg3[%c0_2, %c0_3] : memref<4x512xf32, #tpu.memory_space<vmem>>, vector<4x512xf32>
    tpu.vector_store %arg3[%c0_2, %c0_3], %4 {strides = array<i32>} : memref<4x512xf32, #tpu.memory_space<vmem>>, vector<4x512xf32>,
    return
  }
  func.func @transform_0(%arg0: i32, %arg1: memref<1xf32, #tpu.memory_space<smem>>) -> (i32, i32) {
    %c0_i32 = arith.constant 0 : i32
    %c0_i32_0 = arith.constant 0 : i32
    return %arg0, %c0_i32 : i32, i32
  }
  func.func @transform_1(%arg0: i32, %arg1: memref<1xf32, #tpu.memory_space<smem>>) -> (i32, i32) {
    %c0_i32 = arith.constant 0 : i32
    %c0_i32_0 = arith.constant 0 : i32
    return %arg0, %c0_i32 : i32, i32
  }
}

</mosaic_0001>

<llo_original>
// kernel: tpu_custom_call.1
$region0: #{tpu_custom_call.1}
  #allocation0 [shape = 'u32[]', space=smem, size = 0x4, offset = 0x4, fixed_abs, tag = 'smem constant byte address 0x4 - core index']
  #allocation1 [shape = 'u32[72,128]{1,0:T(1,128)}', space=vmem, size = 0x9000, scoped, tag = 'internal scratch']
  #allocation2 [shape = 's32[1]{0}', space=sflag, size = 0x4, scoped, tag = 'scoped memory for tpu_custom_call.1']
  #allocation3 [shape = 'f32[1]{0:T(128)S(6)}', space=smem, size = 0x200, scoped, tag = 'prefetched SMEM operand 0']
  %s0 = inlined_call_operand.<no memory space> [shape: f32[1], index: 0, kind: input, shape index: {}]
  %s1 = inlined_call_operand.hbm [shape: f32[4,512], index: 1, kind: input, shape index: {}]
  %s2 = inlined_call_operand.hbm [shape: f32[4,512], index: 2, kind: output, shape index: {}]
  %s3 = sld [smem:[#allocation0]]
  $region18: #{tpu_custom_call.1} parent=0
    _
  %s5 = ssub.s32 1, %s3
  %s6 = scalar_select 0, %s5, %s3
  %7 = sst [smem:[#allocation3]] %s0
  $region1: #{tpu_custom_call.1} parent=0
    #allocation4 [shape = 'u8[8192]{0}', space=vmem, size = 0x2000, scoped, tag = 'input window, operand 1, single buffered']
    #allocation5 [shape = 's32[1]{0}', space=sflag, size = 0x4, scoped, tag = 'scoped memory for tpu_custom_call.1']
    #allocation6 [shape = 's32[1]{0}', space=sflag, size = 0x4, scoped, tag = 'scoped memory for tpu_custom_call.1']
    #allocation7 [shape = 'u8[8192]{0}', space=vmem, size = 0x2000, scoped, tag = 'output window, operand 0, single buffered']
    %8 = vsyncpa [#allocation5], 0
    %9 = vsyncpa [#allocation6], 0
    // Predicated region
    $region2: #{tpu_custom_call.1} parent=1 // pred_check
      _
    $region3: #{tpu_custom_call.1} parent=1 // pred_check_branch
      %11 = sbr.rel (0) target = $region5
    $region4: #{tpu_custom_call.1} parent=1 // pred_region
      %13 = vsyncadd [#allocation5], 0
      %s15 = sshll.u32 %s1, 4
      %s16 = int_to_ptr.hbm [resolvable:$true] %s15
      %s17 = sshll.u32 [#allocation4], 4
      %s18 = int_to_ptr.vmem [resolvable:$true] %s17
      %20 = dma.hbm_to_vmem [thread:$0]  %s16, 256, %s18, [#allocation5]
    $region5: #{tpu_custom_call.1} parent=1 // pred_fallthru
      _
    // Predicated region
    $region6: #{tpu_custom_call.1} parent=1 // pred_check
      _
    $region7: #{tpu_custom_call.1} parent=1 // pred_check_branch
      %22 = sbr.rel (0) target = $region9
    $region8: #{tpu_custom_call.1} parent=1 // pred_region
      %24 = dma.done [#allocation5], 256
    $region9: #{tpu_custom_call.1} parent=1 // pred_fallthru
      _
    %s25 = sld [smem:[#allocation3]]
    %v26 = vld [vmem:[#allocation4] sm:$0xff]
    %v27 = vld [vmem:[#allocation4 + $0x8] sm:$0xff]
    %v28 = vstv %s25
    %v29 = vmul.f32 %v28, %v26
    %v30 = vmul.f32 %v28, %v27
    %v31 = vand.u32 2147483647, %v29
    %vm32 = vcmp.le.f32.partialorder %v31, 0.7853982
    %vm33 = vcmp.lt.s32.totalorder %v29, 0
    %v34 = vand.u32 %v29, 2139095040
    %v35 = vshrl.u32 %v34, 23
    %v36 = vsub.s32 %v35, 127
    %v37 = vand.u32 2147483647, %v29
    %v38 = vand.u32 %v37, 8388607
    %v39 = vor.u32 %v38, 8388608
    %v40 = vsub.s32 0, %v39
    %v41 = vadd.s32 %v36, 1
    %vm42 = vcmp.gt.s32.totalorder %v41, 0
    %v43 = vsel %vm42, %v41, 0
    %v44 = vshrl.u32 %v43, 5
    %v45 = vand.u32 %v43, 31
    %v46 = vsub.s32 32, %v45
    %v47 = vshrl.u32 683565275, %v46
    %v48 = vshll.u32 683565275, %v45
    %v49 = vshrl.u32 2475754826, %v46
    %v50 = vor.u32 %v48, %v49
    %v51 = vshll.u32 2475754826, %v45
    %v52 = vshrl.u32 2131351028, %v46
    %v53 = vor.u32 %v51, %v52
    %v54 = vshll.u32 2131351028, %v45
    %v55 = vshrl.u32 2102212464, %v46
    %v56 = vor.u32 %v54, %v55
    %v57 = vshll.u32 2102212464, %v45
    %v58 = vshrl.u32 920167782, %v46
    %v59 = vor.u32 %v57, %v58
    %v60 = vshll.u32 920167782, %v45
    %v61 = vshrl.u32 1326507024, %v46
    %v62 = vor.u32 %v60, %v61
    %vm63 = vcmp.lt.s32.totalorder %v44, 1
    %vm64 = vcmp.lt.s32.totalorder %v44, 2
    %vm65 = vcmp.lt.s32.totalorder %v44, 3
    %vm66 = vcmp.lt.s32.totalorder %v44, 4
    %v67 = vsel %vm63, %v47, %v50
    %v68 = vsel %vm66, %v56, 2102212464
    %v69 = vsel %vm65, %v53, %v68
    %v70 = vsel %vm64, %v67, %v69
    %v71 = vsel %vm63, %v50, %v53
    %v72 = vsel %vm66, %v59, 920167782
    %v73 = vsel %vm65, %v56, %v72
    %v74 = vsel %vm64, %v71, %v73
    %v75 = vsel %vm63, %v53, %v56
    %v76 = vsel %vm66, %v62, 1326507024
    %v77 = vsel %vm65, %v59, %v76
    %v78 = vsel %vm64, %v75, %v77
    %v79 = vshll.u32 %v39, 8
    %v80 = vand.u32 %v79, 65535
    %v81 = vshrl.u32 %v79, 16
    %v82 = vand.u32 %v78, 65535
    %v83 = vshrl.u32 %v78, 16
    %v84 = vmul.u32 %v80, %v82
    %v85 = vmul.u32 %v80, %v83
    %v86 = vmul.u32 %v81, %v82
    %v87 = vmul.u32 %v81, %v83
    %v88 = vshll.u32 %v85, 16
    %v89 = vshrl.u32 %v85, 16
    %v90 = vshll.u32 %v86, 16
    %v91 = vshrl.u32 %v86, 16
    %vm92 = vc.u32 %v84, %v88
    %v93 = vsel %vm92, 1, 0
    %v94 = vadd.s32 %v84, %v88
    %v95 = vadd.s32 %v87, %v93
    %vm96 = vc.u32 %v94, %v90
    %v97 = vsel %vm96, 1, 0
    %v98 = vadd.s32 %v94, %v90
    %v99 = vadd.s32 %v95, %v97
    %v100 = vadd.s32 %v99, %v89
    %v101 = vadd.s32 %v100, %v91
    %v102 = vand.u32 %v79, 65535
    %v103 = vshrl.u32 %v79, 16
    %v104 = vand.u32 %v74, 65535
    %v105 = vshrl.u32 %v74, 16
    %v106 = vmul.u32 %v102, %v104
    %v107 = vmul.u32 %v102, %v105
    %v108 = vmul.u32 %v103, %v104
    %v109 = vmul.u32 %v103, %v105
    %v110 = vshll.u32 %v107, 16
    %v111 = vshrl.u32 %v107, 16
    %v112 = vshll.u32 %v108, 16
    %v113 = vshrl.u32 %v108, 16
    %vm114 = vc.u32 %v106, %v110
    %v115 = vsel %vm114, 1, 0
    %v116 = vadd.s32 %v106, %v110
    %v117 = vadd.s32 %v109, %v115
    %vm118 = vc.u32 %v116, %v112
    %v119 = vsel %vm118, 1, 0
    %v120 = vadd.s32 %v116, %v112
    %v121 = vadd.s32 %v117, %v119
    %v122 = vadd.s32 %v121, %v111
    %v123 = vadd.s32 %v122, %v113
    %v124 = vmul.u32 %v79, %v70
    %v125 = vadd.s32 %v101, %v120
    %vm126 = vc.u32 %v101, %v120
    %v127 = vadd.s32 %v123, 1
    %v128 = vsel %vm126, %v127, %v123
    %v129 = vadd.s32 %v124, %v128
    %v130 = vadd.s32 %v129, 536870912
    %v131 = vshrl.u32 %v130, 30
    %v132 = vshll.u32 %v131, 30
    %v133 = vsub.s32 %v129, %v132
    %vm134 = vcmp.lt.s32.totalorder %v133, 0
    %v135 = vsub.s32 0, %v133
    %v136 = vsel %vm134, %v135, %v133
    %v137 = vclz %v136
    %v138 = vsub.s32 %v137, 2
    %vm139 = vcmp.gt.s32.totalorder 0, %v138
    %v140 = vsel %vm139, 0, %v138
    %v141 = vsub.s32 32, %v140
    %v142 = vshll.u32 %v133, %v140
    %v143 = vshrl.u32 %v125, %v141
    %v144 = vor.u32 %v142, %v143
    %v145 = vsub.s32 4294967266, %v140
    %v146 = vadd.s32 %v145, 127
    %v147 = vshll.u32 %v146, 23
    %v148 = vor.u32 4788187, %v147
    %v149 = vand.u32 2147483647, %v148
    %v151 = vcvt.s32.f32 %v144
    %v152 = vmul.f32 %v151, %v149
    %v153 = vxor.u32 %v152, 2147483648
    %v154 = vsel %vm33, %v153, %v152
    %v155 = vsub.s32 4, %v131
    %v156 = vsel %vm33, %v155, %v131
    %v157 = vsel %vm32, %v29, %v154
    %v158 = vsel %vm32, 0, %v156
    %v159 = vmul.f32 %v157, %v157
    %v160 = vmul.f32 %v159, -0.001358992
    %v161 = vadd.f32 %v160, 0.041655596
    %v162 = vmul.f32 %v159, %v161
    %v163 = vadd.f32 %v162, -0.4999988
    %v164 = vmul.f32 %v159, %v163
    %v165 = vadd.f32 1.0, %v164
    %v166 = vmul.f32 %v157, %v157
    %v167 = vmul.f32 %v166, -0.00019511016
    %v168 = vadd.f32 %v167, 0.008332121
    %v169 = vmul.f32 %v166, %v168
    %v170 = vadd.f32 %v169, -0.16666654
    %v171 = vmul.f32 %v166, %v170
    %v172 = vadd.f32 %v171, 1.0
    %v173 = vmul.f32 %v172, %v157
    %vm174 = vweird.f32 %v29
    %v175 = vadd.s32 %v158, 3
    %v176 = vand.u32 %v175, 3
    %vm177 = vcmp.lt.s32.totalorder %v176, 2
    %vm178 = vcmp.eq.s32.totalorder %v176, 0
    %v179 = vxor.u32 %v173, 2147483648
    %v180 = vsel %vm178, %v165, %v179
    %vm181 = vcmp.eq.s32.totalorder %v176, 2
    %v182 = vxor.u32 %v165, 2147483648
    %v183 = vsel %vm181, %v182, %v173
    %v184 = vsel %vm177, %v180, %v183
    %v185 = vsel %vm174, nan, %v184
    %v186 = vand.u32 2147483647, %v30
    %vm187 = vcmp.le.f32.partialorder %v186, 0.7853982
    %vm188 = vcmp.lt.s32.totalorder %v30, 0
    %v189 = vand.u32 %v30, 2139095040
    %v190 = vshrl.u32 %v189, 23
    %v191 = vsub.s32 %v190, 127
    %v192 = vand.u32 2147483647, %v30
    %v193 = vand.u32 %v192, 8388607
    %v194 = vor.u32 %v193, 8388608
    %v195 = vsub.s32 0, %v194
    %v196 = vadd.s32 %v191, 1
    %vm197 = vcmp.gt.s32.totalorder %v196, 0
    %v198 = vsel %vm197, %v196, 0
    %v199 = vshrl.u32 %v198, 5
    %v200 = vand.u32 %v198, 31
    %v201 = vsub.s32 32, %v200
    %v202 = vshrl.u32 683565275, %v201
    %v203 = vshll.u32 683565275, %v200
    %v204 = vshrl.u32 2475754826, %v201
    %v205 = vor.u32 %v203, %v204
    %v206 = vshll.u32 2475754826, %v200
    %v207 = vshrl.u32 2131351028, %v201
    %v208 = vor.u32 %v206, %v207
    %v209 = vshll.u32 2131351028, %v200
    %v210 = vshrl.u32 2102212464, %v201
    %v211 = vor.u32 %v209, %v210
    %v212 = vshll.u32 2102212464, %v200
    %v213 = vshrl.u32 920167782, %v201
    %v214 = vor.u32 %v212, %v213
    %v215 = vshll.u32 920167782, %v200
    %v216 = vshrl.u32 1326507024, %v201
    %v217 = vor.u32 %v215, %v216
    %vm218 = vcmp.lt.s32.totalorder %v199, 1
    %vm219 = vcmp.lt.s32.totalorder %v199, 2
    %vm220 = vcmp.lt.s32.totalorder %v199, 3
    %vm221 = vcmp.lt.s32.totalorder %v199, 4
    %v222 = vsel %vm218, %v202, %v205
    %v223 = vsel %vm221, %v211, 2102212464
    %v224 = vsel %vm220, %v208, %v223
    %v225 = vsel %vm219, %v222, %v224
    %v226 = vsel %vm218, %v205, %v208
    %v227 = vsel %vm221, %v214, 920167782
    %v228 = vsel %vm220, %v211, %v227
    %v229 = vsel %vm219, %v226, %v228
    %v230 = vsel %vm218, %v208, %v211
    %v231 = vsel %vm221, %v217, 1326507024
    %v232 = vsel %vm220, %v214, %v231
    %v233 = vsel %vm219, %v230, %v232
    %v234 = vshll.u32 %v194, 8
    %v235 = vand.u32 %v234, 65535
    %v236 = vshrl.u32 %v234, 16
    %v237 = vand.u32 %v233, 65535
    %v238 = vshrl.u32 %v233, 16
    %v239 = vmul.u32 %v235, %v237
    %v240 = vmul.u32 %v235, %v238
    %v241 = vmul.u32 %v236, %v237
    %v242 = vmul.u32 %v236, %v238
    %v243 = vshll.u32 %v240, 16
    %v244 = vshrl.u32 %v240, 16
    %v245 = vshll.u32 %v241, 16
    %v246 = vshrl.u32 %v241, 16
    %vm247 = vc.u32 %v239, %v243
    %v248 = vsel %vm247, 1, 0
    %v249 = vadd.s32 %v239, %v243
    %v250 = vadd.s32 %v242, %v248
    %vm251 = vc.u32 %v249, %v245
    %v252 = vsel %vm251, 1, 0
    %v253 = vadd.s32 %v249, %v245
    %v254 = vadd.s32 %v250, %v252
    %v255 = vadd.s32 %v254, %v244
    %v256 = vadd.s32 %v255, %v246
    %v257 = vand.u32 %v234, 65535
    %v258 = vshrl.u32 %v234, 16
    %v259 = vand.u32 %v229, 65535
    %v260 = vshrl.u32 %v229, 16
    %v261 = vmul.u32 %v257, %v259
    %v262 = vmul.u32 %v257, %v260
    %v263 = vmul.u32 %v258, %v259
    %v264 = vmul.u32 %v258, %v260
    %v265 = vshll.u32 %v262, 16
    %v266 = vshrl.u32 %v262, 16
    %v267 = vshll.u32 %v263, 16
    %v268 = vshrl.u32 %v263, 16
    %vm269 = vc.u32 %v261, %v265
    %v270 = vsel %vm269, 1, 0
    %v271 = vadd.s32 %v261, %v265
    %v272 = vadd.s32 %v264, %v270
    %vm273 = vc.u32 %v271, %v267
    %v274 = vsel %vm273, 1, 0
    %v275 = vadd.s32 %v271, %v267
    %v276 = vadd.s32 %v272, %v274
    %v277 = vadd.s32 %v276, %v266
    %v278 = vadd.s32 %v277, %v268
    %v279 = vmul.u32 %v234, %v225
    %v280 = vadd.s32 %v256, %v275
    %vm281 = vc.u32 %v256, %v275
    %v282 = vadd.s32 %v278, 1
    %v283 = vsel %vm281, %v282, %v278
    %v284 = vadd.s32 %v279, %v283
    %v285 = vadd.s32 %v284, 536870912
    %v286 = vshrl.u32 %v285, 30
    %v287 = vshll.u32 %v286, 30
    %v288 = vsub.s32 %v284, %v287
    %vm289 = vcmp.lt.s32.totalorder %v288, 0
    %v290 = vsub.s32 0, %v288
    %v291 = vsel %vm289, %v290, %v288
    %v292 = vclz %v291
    %v293 = vsub.s32 %v292, 2
    %vm294 = vcmp.gt.s32.totalorder 0, %v293
    %v295 = vsel %vm294, 0, %v293
    %v296 = vsub.s32 32, %v295
    %v297 = vshll.u32 %v288, %v295
    %v298 = vshrl.u32 %v280, %v296
    %v299 = vor.u32 %v297, %v298
    %v300 = vsub.s32 4294967266, %v295
    %v301 = vadd.s32 %v300, 127
    %v302 = vshll.u32 %v301, 23
    %v303 = vor.u32 4788187, %v302
    %v304 = vand.u32 2147483647, %v303
    %v306 = vcvt.s32.f32 %v299
    %v307 = vmul.f32 %v306, %v304
    %v308 = vxor.u32 %v307, 2147483648
    %v309 = vsel %vm188, %v308, %v307
    %v310 = vsub.s32 4, %v286
    %v311 = vsel %vm188, %v310, %v286
    %v312 = vsel %vm187, %v30, %v309
    %v313 = vsel %vm187, 0, %v311
    %v314 = vmul.f32 %v312, %v312
    %v315 = vmul.f32 %v314, -0.001358992
    %v316 = vadd.f32 %v315, 0.041655596
    %v317 = vmul.f32 %v314, %v316
    %v318 = vadd.f32 %v317, -0.4999988
    %v319 = vmul.f32 %v314, %v318
    %v320 = vadd.f32 1.0, %v319
    %v321 = vmul.f32 %v312, %v312
    %v322 = vmul.f32 %v321, -0.00019511016
    %v323 = vadd.f32 %v322, 0.008332121
    %v324 = vmul.f32 %v321, %v323
    %v325 = vadd.f32 %v324, -0.16666654
    %v326 = vmul.f32 %v321, %v325
    %v327 = vadd.f32 %v326, 1.0
    %v328 = vmul.f32 %v327, %v312
    %vm329 = vweird.f32 %v30
    %v330 = vadd.s32 %v313, 3
    %v331 = vand.u32 %v330, 3
    %vm332 = vcmp.lt.s32.totalorder %v331, 2
    %vm333 = vcmp.eq.s32.totalorder %v331, 0
    %v334 = vxor.u32 %v328, 2147483648
    %v335 = vsel %vm333, %v320, %v334
    %vm336 = vcmp.eq.s32.totalorder %v331, 2
    %v337 = vxor.u32 %v320, 2147483648
    %v338 = vsel %vm336, %v337, %v328
    %v339 = vsel %vm332, %v335, %v338
    %v340 = vsel %vm329, nan, %v339
    %341 = vst [vmem:[#allocation7] sm:$0xff] %v185
    %342 = vst [vmem:[#allocation7 + $0x8] sm:$0xff] %v340
    // Predicated region
    $region10: #{tpu_custom_call.1} parent=1 // pred_check
      _
    $region11: #{tpu_custom_call.1} parent=1 // pred_check_branch
      %344 = sbr.rel (0) target = $region13
    $region12: #{tpu_custom_call.1} parent=1 // pred_region
      %346 = vsyncadd [#allocation6], 0
      %s348 = sshll.u32 [#allocation7], 4
      %s349 = int_to_ptr.vmem [resolvable:$true] %s348
      %s350 = sshll.u32 %s2, 4
      %s351 = int_to_ptr.hbm [resolvable:$true] %s350
      %353 = dma.vmem_to_hbm [thread:$0]  %s349, 256, %s351, [#allocation6]
    $region13: #{tpu_custom_call.1} parent=1 // pred_fallthru
      _
    // Predicated region
    $region14: #{tpu_custom_call.1} parent=1 // pred_check
      _
    $region15: #{tpu_custom_call.1} parent=1 // pred_check_branch
      %355 = sbr.rel (0) target = $region17
    $region16: #{tpu_custom_call.1} parent=1 // pred_region
      %357 = dma.done [#allocation6], 256
    $region17: #{tpu_custom_call.1} parent=1 // pred_fallthru
      _
    %358 = vsyncpa [#allocation5], 1
    %359 = vsyncpa [#allocation6], 1

</llo_original>
